<compile_context>
chip_gen: v6e
topology: v6e:2x2x1
jax: 0.10.0
libtpu: 0.0.40
codegen_flags: <defaults>
</compile_context>

<pallas_src>
import functools
import math

import jax
import jax.numpy as jnp
from jax.experimental import pallas as pl
from jax.experimental.pallas import tpu as pltpu

_NEG_BIG = -1e30  # finite mask sentinel: avoids exp(-inf - -inf) = NaN with tiled kv


def _pick_tile(dim, target, align):
    """Largest tile <= target that is a multiple of `align` and divides `dim`.

    Falls back to the full dimension (a full-extent block is always legal)."""
    if dim <= target:
        return dim
    t = (target // align) * align
    while t >= align:
        if dim % t == 0:
            return t
        t -= align
    return dim


# ---------------------------------------------------------------------------
# Kernel 1/2: tiled linear layer  y = x @ W.T + b   (W in PyTorch (out, in) layout)
# ---------------------------------------------------------------------------
def _linear_kernel(x_ref, w_ref, b_ref, o_ref, acc_ref):
    @pl.when(pl.program_id(2) == 0)
    def _init():
        acc_ref[...] = jnp.zeros_like(acc_ref)

    # x: (tm, tk) bf16, w: (tn, tk) bf16 -> contract both on their last (lane)
    # dim: MXU-friendly, no XLU transpose of the weight tile.
    acc_ref[...] += jax.lax.dot_general(
        x_ref[...], w_ref[...],
        dimension_numbers=(((1,), (1,)), ((), ())),
        preferred_element_type=jnp.float32)

    @pl.when(pl.program_id(2) == pl.num_programs(2) - 1)
    def _finalize():
        # bias added once per output tile, on the last K step only
        o_ref[...] = (acc_ref[...] + b_ref[...]).astype(o_ref.dtype)


def linear(x2d, w, b, *, out_dtype=jnp.float32, tm=512, tn=512, tk=512):
    M, K = x2d.shape
    N, K2 = w.shape
    assert K == K2, (x2d.shape, w.shape)

    tm = _pick_tile(M, tm, 8)      # sublane axis of x / o blocks
    tn = _pick_tile(N, tn, 128)    # lane axis of o / b blocks
    tk = _pick_tile(K, tk, 128)    # lane axis of x / w blocks

    x_bf = x2d.astype(jnp.bfloat16)
    w_bf = w.astype(jnp.bfloat16)
    b2d = b.reshape(1, N).astype(jnp.float32)

    grid = (M // tm, N // tn, K // tk)
    return pl.pallas_call(
        _linear_kernel,
        out_shape=jax.ShapeDtypeStruct((M, N), out_dtype),
        grid_spec=pltpu.PrefetchScalarGridSpec(
            num_scalar_prefetch=0,
            grid=grid,
            in_specs=[
                pl.BlockSpec((tm, tk), lambda i, j, k: (i, k)),
                pl.BlockSpec((tn, tk), lambda i, j, k: (j, k)),
                pl.BlockSpec((1, tn), lambda i, j, k: (0, j)),
            ],
            out_specs=pl.BlockSpec((tm, tn), lambda i, j, k: (i, j)),
            scratch_shapes=[pltpu.VMEM((tm, tn), jnp.float32)],
        ),
        compiler_params=pltpu.CompilerParams(
            dimension_semantics=("parallel", "parallel", "arbitrary")),
    )(x_bf, w_bf, b2d)


# ---------------------------------------------------------------------------
# Kernel 2/2: flash-style causal attention, heads handled inside the kernel
# ---------------------------------------------------------------------------
def _attn_kernel(q_ref, k_ref, v_ref, o_ref, m_ref, l_ref, acc_ref,
                 *, n_head, head_dim, scale):
    tq = q_ref.shape[1]
    tkv = k_ref.shape[1]
    qi = pl.program_id(1)
    ki = pl.program_id(2)

    @pl.when(ki == 0)
    def _init():
        m_ref[...] = jnp.full_like(m_ref, _NEG_BIG)
        l_ref[...] = jnp.zeros_like(l_ref)
        acc_ref[...] = jnp.zeros_like(acc_ref)

    q_start = qi * tq
    kv_start = ki * tkv

    # whole-tile causal skip: this kv tile only contributes if it intersects
    # the lower-triangular region of this q tile (~halves the attention work).
    @pl.when(kv_start <= q_start + (tq - 1))
    def _compute():
        q = q_ref[0]                    # (tq,  n_head*head_dim) bf16
        k = k_ref[0]                    # (tkv, n_head*head_dim) bf16
        v = v_ref[0]

        row = q_start + jax.lax.broadcasted_iota(jnp.int32, (tq, tkv), 0)
        col = kv_start + jax.lax.broadcasted_iota(jnp.int32, (tq, tkv), 1)
        causal = col <= row

        for h in range(n_head):                 # static unrolled head loop
            sl = slice(h * head_dim, (h + 1) * head_dim)
            # pre-scale q on the (tq, hd) tile instead of scaling (tq, tkv) scores
            q_h = (q[:, sl].astype(jnp.float32) * scale).astype(q.dtype)
            k_h = k[:, sl]
            v_h = v[:, sl]

            s = jax.lax.dot_general(            # (tq, tkv) f32, no transpose
                q_h, k_h,
                dimension_numbers=(((1,), (1,)), ((), ())),
                preferred_element_type=jnp.float32)
            s = jnp.where(causal, s, _NEG_BIG)

            m_prev = m_ref[h]                                   # (tq, 1)
            m_new = jnp.maximum(m_prev, jnp.max(s, axis=-1, keepdims=True))
            alpha = jnp.exp(m_prev - m_new)
            p = jnp.exp(s - m_new)                              # (tq, tkv) f32

            l_ref[h] = alpha * l_ref[h] + jnp.sum(p, axis=-1, keepdims=True)
            acc_ref[h] = alpha * acc_ref[h] + jnp.dot(
                p.astype(v_h.dtype), v_h, preferred_element_type=jnp.float32)
            m_ref[h] = m_new

    @pl.when(ki == pl.num_programs(2) - 1)
    def _finalize():
        outs = []
        for h in range(n_head):
            inv_l = pl.reciprocal(l_ref[h], approx=True)        # EUP slot
            outs.append((acc_ref[h] * inv_l).astype(o_ref.dtype))
        # one lane-dense (tq, C) store
        o_ref[0] = jnp.concatenate(outs, axis=-1)


def causal_attention_fused(qkv, B, T, C, n_head, *, tq=128, tkv=128):
    """qkv: (B*T, 3C) bf16, columns ordered [q | k | v].  Returns (B, T, C) bf16."""
    head_dim = C // n_head
    scale = 1.0 / math.sqrt(head_dim)
    tq = _pick_tile(T, tq, 8)
    tkv = _pick_tile(T, tkv, 8)
    grid = (B, T // tq, T // tkv)

    kernel = functools.partial(
        _attn_kernel, n_head=n_head, head_dim=head_dim, scale=scale)

    if C % 128 == 0:
        # Lane-legal: slice q/k/v column groups directly out of the (B, T, 3C)
        # QKV buffer via the index maps -- no split, no transpose, no extra pass.
        qkv3 = qkv.reshape(B, T, 3 * C)
        q_in = k_in = v_in = qkv3
        q_spec = pl.BlockSpec((1, tq, C), lambda b, qi, ki: (b, qi, 0))
        k_spec = pl.BlockSpec((1, tkv, C), lambda b, qi, ki: (b, ki, 1))
        v_spec = pl.BlockSpec((1, tkv, C), lambda b, qi, ki: (b, ki, 2))
    else:
        # Small-C fallback (test shapes): cheap last-dim split keeps block last
        # dim equal to the full array dim.  Still no head transposes.
        qkv3 = qkv.reshape(B, T, 3, C)
        q_in, k_in, v_in = qkv3[:, :, 0, :], qkv3[:, :, 1, :], qkv3[:, :, 2, :]
        q_spec = pl.BlockSpec((1, tq, C), lambda b, qi, ki: (b, qi, 0))
        k_spec = pl.BlockSpec((1, tkv, C), lambda b, qi, ki: (b, ki, 0))
        v_spec = pl.BlockSpec((1, tkv, C), lambda b, qi, ki: (b, ki, 0))

    return pl.pallas_call(
        kernel,
        out_shape=jax.ShapeDtypeStruct((B, T, C), jnp.bfloat16),
        grid_spec=pltpu.PrefetchScalarGridSpec(
            num_scalar_prefetch=0,
            grid=grid,
            in_specs=[q_spec, k_spec, v_spec],
            out_specs=pl.BlockSpec((1, tq, C), lambda b, qi, ki: (b, qi, 0)),
            scratch_shapes=[
                pltpu.VMEM((n_head, tq, 1), jnp.float32),         # running max
                pltpu.VMEM((n_head, tq, 1), jnp.float32),         # running sum
                pltpu.VMEM((n_head, tq, head_dim), jnp.float32),  # output acc
            ],
        ),
        compiler_params=pltpu.CompilerParams(
            dimension_semantics=("parallel", "parallel", "arbitrary")),
    )(q_in, k_in, v_in)


# ---------------------------------------------------------------------------
# Full forward pass (matches CausalSelfAttention.forward, dropout = 0.0)
# ---------------------------------------------------------------------------
def causal_self_attention(x, params, n_head):
    B, T, C = x.shape
    x2d = x.reshape(B * T, C)

    # QKV projection -> bf16 output feeds the attention kernel directly
    qkv = linear(x2d, params["w_attn"], params["b_attn"],
                 out_dtype=jnp.bfloat16)                        # (B*T, 3C)

    # Flash-style causal attention, output already merged as (B, T, C)
    y = causal_attention_fused(qkv, B, T, C, n_head)            # (B, T, C) bf16

    # Output projection
    out = linear(y.reshape(B * T, C), params["w_proj"], params["b_proj"],
                 out_dtype=jnp.float32)
    return out.reshape(B, T, C)


# ---------------------------------------------------------------------------
# Pure-JAX reference (for a sanity check only)
# ---------------------------------------------------------------------------
def _reference(x, params, n_head):
    B, T, C = x.shape
    hd = C // n_head
    qkv = x.reshape(B * T, C) @ params["w_attn"].T + params["b_attn"]
    q, k, v = jnp.split(qkv.reshape(B, T, 3 * C), 3, axis=-1)

    def heads(t):
        return t.reshape(B, T, n_head, hd).transpose(0, 2, 1, 3)

    q, k, v = heads(q), heads(k), heads(v)
    s = jnp.einsum("bhqd,bhkd->bhqk", q, k) / math.sqrt(hd)
    mask = jnp.tril(jnp.ones((T, T), dtype=bool))
    s = jnp.where(mask, s, -jnp.inf)
    p = jax.nn.softmax(s, axis=-1)
    y = jnp.einsum("bhqk,bhkd->bhqd", p, v)
    y = y.transpose(0, 2, 1, 3).reshape(B * T, C)
    y = y @ params["w_proj"].T + params["b_proj"]
    return y.reshape(B, T, C)


if __name__ == "__main__":
    # Small shapes consistent with the module: B=2, T=8, n_head=4, n_embd=32
    B, T, n_head, n_embd = 2, 8, 4, 32

    key = jax.random.PRNGKey(0)
    kx, k1, k2, k3, k4 = jax.random.split(key, 5)

    x = jax.random.normal(kx, (B, T, n_embd), dtype=jnp.float32)
    params = {
        # nn.Linear(n_embd, 3*n_embd): weight (3C, C), bias (3C,)
        "w_attn": 0.02 * jax.random.normal(k1, (3 * n_embd, n_embd), jnp.float32),
        "b_attn": 0.02 * jax.random.normal(k2, (3 * n_embd,), jnp.float32),
        # nn.Linear(n_embd, n_embd): weight (C, C), bias (C,)
        "w_proj": 0.02 * jax.random.normal(k3, (n_embd, n_embd), jnp.float32),
        "b_proj": 0.02 * jax.random.normal(k4, (n_embd,), jnp.float32),
    }

    y = causal_self_attention(x, params, n_head)
    jax.block_until_ready(y)
    assert y.shape == (B, T, n_embd) and y.dtype == jnp.float32

    # loose sanity check (bf16 MXU inputs + approx reciprocal => relaxed tol)
    y_ref = _reference(x, params, n_head)
    assert jnp.allclose(y, y_ref, rtol=5e-2, atol=5e-2), (
        float(jnp.max(jnp.abs(y - y_ref))))

    # TODO(synk): dropout is omitted (config.dropout = 0.0 -> identity).
    print("KERNEL_OK")
</pallas_src>

<mosaic_0001>
module attributes {stable_mosaic.version = 11 : i64} {
  func.func @_linear_kernel(%arg0: i32, %arg1: i32, %arg2: i32, %arg3: memref<16x32xbf16, #tpu.memory_space<vmem>>, %arg4: memref<96x32xbf16, #tpu.memory_space<vmem>>, %arg5: memref<1x96xf32, #tpu.memory_space<vmem>>, %arg6: memref<16x96xbf16, #tpu.memory_space<vmem>>, %arg7: memref<16x96xf32, #tpu.memory_space<vmem>>) attributes {dimension_semantics = [#tpu.dimension_semantics<parallel>, #tpu.dimension_semantics<parallel>, #tpu.dimension_semantics<arbitrary>], iteration_bounds = array<i64: 1, 1, 1>, scalar_prefetch = 0 : i64, scratch_operands = 1 : i64, tpu.core_type = #tpu.core_type<tc>, window_params = [{transform_indices = @transform_0, window_bounds = array<i64: 16, 32>}, {transform_indices = @transform_1, window_bounds = array<i64: 96, 32>}, {transform_indices = @transform_2, window_bounds = array<i64: 1, 96>}, {transform_indices = @transform_3, window_bounds = array<i64: 16, 96>}]} {
    %c0_i32 = arith.constant 0 : i32
    %0 = arith.cmpi eq, %arg2, %c0_i32 : i32
    %1 = arith.extui %0 : i1 to i32
    %c0_i32_0 = arith.constant 0 : i32
    %2 = arith.cmpi ne, %1, %c0_i32_0 : i32
    scf.if %2 {
      %cst_10 = arith.constant 0.000000e+00 : f32
      %12 = vector.broadcast %cst_10 : f32 to vector<16x96xf32>
      %c0_11 = arith.constant 0 : index
      %c0_12 = arith.constant 0 : index
      %13 = vector.load %arg7[%c0_11, %c0_12] : memref<16x96xf32, #tpu.memory_space<vmem>>, vector<16x96xf32>
      tpu.vector_store %arg7[%c0_11, %c0_12], %12 {strides = array<i32>} : memref<16x96xf32, #tpu.memory_space<vmem>>, vector<16x96xf32>,
    } else {
    }
    %c0 = arith.constant 0 : index
    %c0_1 = arith.constant 0 : index
    %3 = vector.load %arg7[%c0, %c0_1] : memref<16x96xf32, #tpu.memory_space<vmem>>, vector<16x96xf32>
    %c0_2 = arith.constant 0 : index
    %c0_3 = arith.constant 0 : index
    %4 = vector.load %arg3[%c0_2, %c0_3] : memref<16x32xbf16, #tpu.memory_space<vmem>>, vector<16x32xbf16>
    %c0_4 = arith.constant 0 : index
    %c0_5 = arith.constant 0 : index
    %5 = vector.load %arg4[%c0_4, %c0_5] : memref<96x32xbf16, #tpu.memory_space<vmem>>, vector<96x32xbf16>
    %cst = arith.constant dense<0.000000e+00> : vector<16x96xf32>
    %6 = tpu.matmul %4, %5, %cst {dimension_numbers = #tpu.dot_dimension_numbers<[1], [1], [0], [0], [0, 0, 1, 0], [], []>} : vector<16x32xbf16>, vector<96x32xbf16>, vector<16x96xf32> -> vector<16x96xf32>
    %7 = arith.addf %3, %6 : vector<16x96xf32>
    %c0_6 = arith.constant 0 : index
    %c0_7 = arith.constant 0 : index
    %8 = vector.load %arg7[%c0_6, %c0_7] : memref<16x96xf32, #tpu.memory_space<vmem>>, vector<16x96xf32>
    tpu.vector_store %arg7[%c0_6, %c0_7], %7 {strides = array<i32>} : memref<16x96xf32, #tpu.memory_space<vmem>>, vector<16x96xf32>,
    %c0_i32_8 = arith.constant 0 : i32
    %9 = arith.cmpi eq, %arg2, %c0_i32_8 : i32
    %10 = arith.extui %9 : i1 to i32
    %c0_i32_9 = arith.constant 0 : i32
    %11 = arith.cmpi ne, %10, %c0_i32_9 : i32
    scf.if %11 {
      %c0_10 = arith.constant 0 : index
      %c0_11 = arith.constant 0 : index
      %12 = vector.load %arg7[%c0_10, %c0_11] : memref<16x96xf32, #tpu.memory_space<vmem>>, vector<16x96xf32>
      %c0_12 = arith.constant 0 : index
      %c0_13 = arith.constant 0 : index
      %13 = vector.load %arg5[%c0_12, %c0_13] : memref<1x96xf32, #tpu.memory_space<vmem>>, vector<1x96xf32>
      %14 = vector.broadcast %13 : vector<1x96xf32> to vector<16x96xf32>
      %15 = arith.addf %12, %14 : vector<16x96xf32>
      %16 = arith.truncf %15 : vector<16x96xf32> to vector<16x96xbf16>
      %c0_14 = arith.constant 0 : index
      %c0_15 = arith.constant 0 : index
      %17 = vector.load %arg6[%c0_14, %c0_15] : memref<16x96xbf16, #tpu.memory_space<vmem>>, vector<16x96xbf16>
      tpu.vector_store %arg6[%c0_14, %c0_15], %16 {strides = array<i32>} : memref<16x96xbf16, #tpu.memory_space<vmem>>, vector<16x96xbf16>,
    } else {
    }
    return
  }
  func.func @transform_0(%arg0: i32, %arg1: i32, %arg2: i32) -> (i32, i32) {
    %c0_i32 = arith.constant 0 : i32
    return %arg0, %arg2 : i32, i32
  }
  func.func @transform_1(%arg0: i32, %arg1: i32, %arg2: i32) -> (i32, i32) {
    %c0_i32 = arith.constant 0 : i32
    return %arg1, %arg2 : i32, i32
  }
  func.func @transform_2(%arg0: i32, %arg1: i32, %arg2: i32) -> (i32, i32) {
    %c0_i32 = arith.constant 0 : i32
    %c0_i32_0 = arith.constant 0 : i32
    return %c0_i32, %arg1 : i32, i32
  }
  func.func @transform_3(%arg0: i32, %arg1: i32, %arg2: i32) -> (i32, i32) {
    %c0_i32 = arith.constant 0 : i32
    return %arg0, %arg1 : i32, i32
  }
}

</mosaic_0001>

<llo_original>
// kernel: tpu_custom_call.1
$region0: #{tpu_custom_call.1}
  #allocation0 [shape = 'u32[]', space=smem, size = 0x4, offset = 0x4, fixed_abs, tag = 'smem constant byte address 0x4 - core index']
  #allocation1 [shape = 'u32[144,128]{1,0:T(1,128)}', space=vmem, size = 0x12000, scoped, tag = 'internal scratch']
  #allocation2 [shape = 'f32[16,96]{1,0:T(8,128)}', space=vmem, size = 0x2000, scoped, tag = 'scratch operand']
  %s0 = inlined_call_operand.vmem [shape: bf16[16,32], index: 0, kind: input, shape index: {}]
  %s1 = inlined_call_operand.vmem [shape: bf16[96,32], index: 1, kind: input, shape index: {}]
  %s2 = inlined_call_operand.vmem [shape: f32[1,96], index: 2, kind: input, shape index: {}]
  %s3 = inlined_call_operand.hbm [shape: bf16[16,96], index: 3, kind: output, shape index: {}]
  %s4 = sld [smem:[#allocation0]]
  $region30: #{tpu_custom_call.1} parent=0
    _
  %s6 = ssub.s32 1, %s4
  %s7 = scalar_select 0, %s6, %s4
  $region1: #{tpu_custom_call.1} parent=0
    #allocation3 [shape = 'u8[4096]{0}', space=vmem, size = 0x1000, scoped, tag = 'output window, operand 0, single buffered']
    #allocation4 [shape = 's32[1]{0}', space=sflag, size = 0x4, scoped, tag = 'scoped memory for tpu_custom_call.1']
    %8 = vsyncpa [#allocation4], 0
    // Predicated region
    $region2: #{tpu_custom_call.1} parent=1 // pred_check
      _
    $region3: #{tpu_custom_call.1} parent=1 // pred_check_branch
      %10 = sbr.rel (0) target = $region5
    $region4: #{tpu_custom_call.1} parent=1 // pred_region
      _
    $region5: #{tpu_custom_call.1} parent=1 // pred_fallthru
      _
    // Predicated region
    $region6: #{tpu_custom_call.1} parent=1 // pred_check
      _
    $region7: #{tpu_custom_call.1} parent=1 // pred_check_branch
      %12 = sbr.rel (0) target = $region9
    $region8: #{tpu_custom_call.1} parent=1 // pred_region
      _
    $region9: #{tpu_custom_call.1} parent=1 // pred_fallthru
      _
    // Predicated region
    $region10: #{tpu_custom_call.1} parent=1 // pred_check
      _
    $region11: #{tpu_custom_call.1} parent=1 // pred_check_branch
      %14 = sbr.rel (0) target = $region13
    $region12: #{tpu_custom_call.1} parent=1 // pred_region
      _
    $region13: #{tpu_custom_call.1} parent=1 // pred_fallthru
      _
    %p16 = scmp.eq.s32.totalorder 0, 0
    // Predicated region
    $region14: #{tpu_custom_call.1} parent=1 // pred_check
      %p17 = pneg %p16
    $region15: #{tpu_custom_call.1} parent=1 // pred_check_branch
      %19 = sbr.rel (%p17) target = $region17
    $region16: #{tpu_custom_call.1} parent=1 // pred_region
      %vm20 = vcmask 785408
      %21 = vst.msk [vmem:[#allocation2] sm:$0xff] %vm20, 0.0
      %22 = vst.msk [vmem:[#allocation2 + $0x8] sm:$0xff] %vm20, 0.0
    $region17: #{tpu_custom_call.1} parent=1 // pred_fallthru
      _
    %v23 = vld [vmem:[#allocation2] sm:$0xff]
    %v24 = vld [vmem:[#allocation2 + $0x8] sm:$0xff]
    %v25 = vld [vmem:[%s0] sm:$0xf]
    %v26 = vld [vmem:[%s0 + $0x4] sm:$0xf]
    %v27 = vld [vmem:[%s1] sm:$0xf]
    %v28 = vld [vmem:[%s1 + $0x4] sm:$0xf]
    %v29 = vld [vmem:[%s1 + $0x8] sm:$0xf]
    %v30 = vld [vmem:[%s1 + $0xc] sm:$0xf]
    %v31 = vld [vmem:[%s1 + $0x10] sm:$0xf]
    %v32 = vld [vmem:[%s1 + $0x14] sm:$0xf]
    %v33 = vld [vmem:[%s1 + $0x18] sm:$0xf]
    %v34 = vld [vmem:[%s1 + $0x1c] sm:$0xf]
    %v35 = vld [vmem:[%s1 + $0x20] sm:$0xf]
    %v36 = vld [vmem:[%s1 + $0x24] sm:$0xf]
    %v37 = vld [vmem:[%s1 + $0x28] sm:$0xf]
    %v38 = vld [vmem:[%s1 + $0x2c] sm:$0xf]
    %v41 = vunpack.c.l.b16 %v25
    %v42 = vunpack.c.l.b16 %v26
    %v43 = vpack.c.b16 %v42, %v41
    %v56 = vunpack.c.l.b16 %v27
    %v57 = vunpack.c.l.b16 %v28
    %v58 = vunpack.c.l.b16 %v29
    %v59 = vunpack.c.l.b16 %v30
    %v60 = vunpack.c.l.b16 %v31
    %v61 = vunpack.c.l.b16 %v32
    %v62 = vunpack.c.l.b16 %v33
    %v63 = vunpack.c.l.b16 %v34
    %v64 = vunpack.c.l.b16 %v35
    %v65 = vunpack.c.l.b16 %v36
    %v66 = vunpack.c.l.b16 %v37
    %v67 = vunpack.c.l.b16 %v38
    %v68 = vpack.c.b16 %v57, %v56
    %v69 = vpack.c.b16 %v59, %v58
    %v70 = vpack.c.b16 %v61, %v60
    %v71 = vpack.c.b16 %v63, %v62
    %v72 = vpack.c.b16 %v65, %v64
    %v73 = vpack.c.b16 %v67, %v66
    %vm74 = vcmask 261120
    %v76 = vsel %vm74, %v43, 0
    %v79 = vsel %vm74, %v68, 0
    %v82 = vsel %vm74, %v69, 0
    %v85 = vsel %vm74, %v70, 0
    %v88 = vsel %vm74, %v71, 0
    %v91 = vsel %vm74, %v72, 0
    %v94 = vsel %vm74, %v73, 0
    %96 = vmatprep.subr.bf16.mxu0 0
    %97 = vmatpush1.bf16.xpose.msra.mxu0 0
    %98 = vmatprep.subr.bf16.mxu0 0
    %99 = vmatpush1.bf16.xpose.msra.mxu0 0
    %100 = vmatprep.subr.bf16.mxu0 0
    %101 = vmatpush1.bf16.xpose.msra.mxu0 %v94
    %102 = vmatprep.subr.bf16.mxu0 0
    %103 = vmatpush1.bf16.xpose.msra.mxu0 %v91
    %104 = vmatprep.subr.bf16.mxu0 0
    %105 = vmatpush1.bf16.xpose.msra.mxu0 %v88
    %106 = vmatprep.subr.bf16.mxu0 0
    %107 = vmatpush1.bf16.xpose.msra.mxu0 %v85
    %108 = vmatprep.subr.bf16.mxu0 0
    %109 = vmatpush1.bf16.xpose.msra.mxu0 %v82
    %110 = vmatprep.subr.bf16.mxu0 0
    %111 = vmatpush1.bf16.xpose.msra.mxu0 %v79
    %112 = vmatprep.subr.bf16.mxu0 0
    %113 = vmatpush2.bf16.xpose.msra.mxu0 0
    %114 = vmatprep.subr.bf16.mxu0 0
    %115 = vmatpush2.bf16.xpose.msra.mxu0 0
    %116 = vmatprep.subr.bf16.mxu0 0
    %117 = vmatpush2.bf16.xpose.msra.mxu0 0
    %118 = vmatprep.subr.bf16.mxu0 0
    %119 = vmatpush2.bf16.xpose.msra.mxu0 0
    %120 = vmatprep.subr.bf16.mxu0 0
    %121 = vmatpush2.bf16.xpose.msra.mxu0 0
    %122 = vmatprep.subr.bf16.mxu0 0
    %123 = vmatpush2.bf16.xpose.msra.mxu0 0
    %124 = vmatprep.subr.bf16.mxu0 0
    %125 = vmatpush2.bf16.xpose.msra.mxu0 0
    %126 = vmatprep.subr.bf16.mxu0 0
    %127 = vmatpush2.bf16.xpose.msra.mxu0 0
    %128 = vmatprep.mubr.bf16.mxu0 0
    %129 = vmatmul.mubr.bf16.gmra.mxu0 %v76
    %v130 = vpop.f32.mrf.mxu0
    %v131 = vadd.f32 0.0, %v130
    %v132 = vpop.f32.mrf.mxu0
    %v133 = vpop.f32.mrf.mxu0
    %v134 = vadd.f32 0.0, %v133
    %v135 = vpop.f32.mrf.mxu0
    %136 = vdwg.mxu0
    %v137 = vadd.f32 %v23, %v131
    %v138 = vadd.f32 %v24, %v134
    %vm139 = vcmask 785408
    %140 = vst.msk [vmem:[#allocation2] sm:$0xff] %vm139, %v137
    %141 = vst.msk [vmem:[#allocation2 + $0x8] sm:$0xff] %vm139, %v138
    // Predicated region
    $region18: #{tpu_custom_call.1} parent=1 // pred_check
      %p142 = pneg %p16
    $region19: #{tpu_custom_call.1} parent=1 // pred_check_branch
      %144 = sbr.rel (%p142) target = $region21
    $region20: #{tpu_custom_call.1} parent=1 // pred_region
      %v145 = vld [vmem:[#allocation2] sm:$0xff]
      %v146 = vld [vmem:[#allocation2 + $0x8] sm:$0xff]
      %v147 = vld [vmem:[%s2] sm:$0x1]
      %v149 = vlaneseq
      %v150 = vshrl.u32 %v149, 7
      %v151 = vsub.s32 0, %v150
      %v152 = vrot.slane %v147, %v151
      %v154 = vadd.f32 %v145, %v152
      %v155 = vadd.f32 %v146, %v152
      %v156 = vpack.c.bf16 %v155, %v154
      %v158 = vunpack.c.l.b16 %v156
      %v159 = vunpack.c.h.b16 %v156
      %v160 = vpack.c.b16 %v158, %v158
      %v161 = vpack.c.b16 %v159, %v159
      %vm164 = vcmask 781312
      %165 = vst.msk [vmem:[#allocation3] sm:$0xf] %vm164, %v160
      %166 = vst.msk [vmem:[#allocation3 + $0x4] sm:$0xf] %vm164, %v161
    $region21: #{tpu_custom_call.1} parent=1 // pred_fallthru
      _
    // Predicated region
    $region22: #{tpu_custom_call.1} parent=1 // pred_check
      _
    $region23: #{tpu_custom_call.1} parent=1 // pred_check_branch
      %168 = sbr.rel (0) target = $region25
    $region24: #{tpu_custom_call.1} parent=1 // pred_region
      %s170 = ssub.s32 128, 128
      %171 = vsyncadd [#allocation4], %s170
      %s172 = sshll.u32 [#allocation3], 4
      %s173 = int_to_ptr.vmem [resolvable:$true] %s172
      %178 = dma.vmem_to_hbm [thread:$0]  %s173, 128, %s3, [#allocation4], 64, 64, 4
    $region25: #{tpu_custom_call.1} parent=1 // pred_fallthru
      _
    // Predicated region
    $region26: #{tpu_custom_call.1} parent=1 // pred_check
      _
    $region27: #{tpu_custom_call.1} parent=1 // pred_check_branch
      %180 = sbr.rel (0) target = $region29
    $region28: #{tpu_custom_call.1} parent=1 // pred_region
      %181 = dma.done [#allocation4], 128
    $region29: #{tpu_custom_call.1} parent=1 // pred_fallthru
      _
    %182 = vsyncpa [#allocation4], 1

</llo_original>
